<compile_context>
chip_gen: v7x
topology: tpu7x:2x2x1
jax: 0.10.0
libtpu: 0.0.40
codegen_flags: <defaults>
</compile_context>

<pallas_src>
import functools

import jax
import jax.numpy as jnp
from jax.experimental import pallas as pl
from jax.experimental.pallas import tpu as pltpu


def _round_up(x, m):
    return ((x + m - 1) // m) * m


# ----------------------------- Pallas kernel ------------------------------ #
def _linear_block_kernel(x_ref, w_ref, b_ref, o_ref, acc_ref, *, use_bf16):
    # x_ref: (block_b, block_k)   row tile of the (flattened, padded) batch
    # w_ref: (block_k, out_p)     K-tile of the folded weight (BN + residual folded)
    # b_ref: (1, out_p)           folded bias
    # o_ref: (block_b, out_p)     output tile (lane-dense: out_p % 128 == 0)
    # acc_ref: (block_b, out_p) f32 accumulator, resident across the K axis.
    k = pl.program_id(1)

    @pl.when(k == 0)
    def _():
        acc_ref[...] = jnp.zeros_like(acc_ref)

    x = x_ref[...]
    if use_bf16:
        # W' is already bf16 (cast once in the wrapper); accumulate in f32.
        x = x.astype(jnp.bfloat16)
    acc_ref[...] += jnp.dot(x, w_ref[...], preferred_element_type=jnp.float32)

    # TODO(synk): training-mode Dropout(p) would use pltpu.prng_seed /
    # prng_random_bits; in eval mode Dropout is the identity and is elided.
    # act=None -> no activation.

    @pl.when(k == pl.num_programs(1) - 1)
    def _():
        o_ref[...] = (acc_ref[...] + b_ref[...]).astype(o_ref.dtype)


# ------------------------------- Wrapper ----------------------------------- #
def linear_block_forward(x, params, *, residual, eps=1e-5,
                         use_bf16_matmul=True,
                         max_block_rows=512, max_block_k=512,
                         vmem_tile_budget_bytes=24 * 1024 * 1024):
    """Fused (folded) BN1d + Linear (+ residual) forward, eval-mode semantics."""
    orig_shape = x.shape
    if x.ndim == 3:
        x2 = x.reshape(-1, x.shape[-1])          # BN1d over features == flatten B,L
    elif x.ndim == 2:
        x2 = x
    else:
        raise NotImplementedError("LinearBlock only supports 2-D or 3-D input")

    gamma, beta, run_mean, run_var, w_t, bias = params
    n_rows, in_size = x2.shape
    out_size = w_t.shape[1]

    # ---- Fold BatchNorm (eval mode) and the residual identity into W / b ----
    #   x_bn = x*scale + shift;  z = x_bn @ M + bias, M = W^T (+ I if residual)
    #        = x @ (diag(scale) @ M) + (shift @ M + bias)
    scale = (gamma * jax.lax.rsqrt(run_var + eps)).reshape(1, in_size)
    shift = (beta.reshape(1, in_size) - run_mean.reshape(1, in_size) * scale)
    m = w_t
    if residual:
        m = m + jnp.eye(in_size, dtype=m.dtype)      # residual implies in == out
    w_eff = scale.reshape(in_size, 1) * m            # (in, out)
    b_eff = shift @ m + bias.reshape(1, out_size)    # (1, out)

    # ---- Pad to lane/sublane-friendly shapes (lane-dense output & input) ----
    in_p = _round_up(in_size, 128)
    out_p = _round_up(out_size, 128)
    block_k = min(in_p, max_block_k)

    # Row tile: as big as possible within a conservative VMEM tile budget
    # (safe on v7x's 64 MiB / 32 MiB-scoped VMEM as well as v5e/v6e).
    block_b = min(max_block_rows, _round_up(n_rows, 8))

    def _est(bb):
        w_item = 2 if use_bf16_matmul else 4
        return (2 * bb * block_k * 4        # double-buffered x tiles (f32)
                + 2 * block_k * out_p * w_item   # double-buffered W tiles
                + 2 * bb * out_p * 4        # double-buffered out tiles
                + bb * out_p * 4            # f32 accumulator
                + out_p * 4)                # bias
    while _est(block_b) > vmem_tile_budget_bytes and block_b > 8:
        block_b //= 2

    rows_p = _round_up(n_rows, block_b)

    x_pad = jnp.pad(x2, ((0, rows_p - n_rows), (0, in_p - in_size)))
    w_pad = jnp.pad(w_eff, ((0, in_p - in_size), (0, out_p - out_size)))
    b_pad = jnp.pad(b_eff, ((0, 0), (0, out_p - out_size)))
    if use_bf16_matmul:
        w_pad = w_pad.astype(jnp.bfloat16)   # cast params once, not per tile

    grid = (rows_p // block_b, in_p // block_k)

    kernel = functools.partial(_linear_block_kernel, use_bf16=use_bf16_matmul)

    cost = pl.CostEstimate(
        flops=2 * rows_p * in_p * out_p,
        transcendentals=0,
        bytes_accessed=(x_pad.size * x_pad.dtype.itemsize
                        + w_pad.size * w_pad.dtype.itemsize
                        + b_pad.size * b_pad.dtype.itemsize
                        + rows_p * out_p * x2.dtype.itemsize))

    out_pad = pl.pallas_call(
        kernel,
        out_shape=jax.ShapeDtypeStruct((rows_p, out_p), x2.dtype),
        grid_spec=pltpu.PrefetchScalarGridSpec(
            num_scalar_prefetch=0,
            grid=grid,
            in_specs=[
                pl.BlockSpec((block_b, block_k), lambda i, k: (i, k)),  # x
                pl.BlockSpec((block_k, out_p), lambda i, k: (k, 0)),    # W'
                pl.BlockSpec((1, out_p), lambda i, k: (0, 0)),          # b'
            ],
            out_specs=pl.BlockSpec((block_b, out_p), lambda i, k: (i, 0)),
            scratch_shapes=[pltpu.VMEM((block_b, out_p), jnp.float32)],
        ),
        compiler_params=pltpu.CompilerParams(
            dimension_semantics=("parallel", "arbitrary"),
            vmem_limit_bytes=32 * 1024 * 1024),
        cost_estimate=cost,
    )(x_pad, w_pad, b_pad)

    out2 = out_pad[:n_rows, :out_size]
    if len(orig_shape) == 3:
        return out2.reshape(orig_shape[0], orig_shape[1], out_size)
    return out2


# ---------------------------- Pure-JAX reference --------------------------- #
def linear_block_reference(x, params, *, residual, eps=1e-5):
    gamma, beta, run_mean, run_var, w_t, bias = params
    x_bn = (x - run_mean) * (gamma * jax.lax.rsqrt(run_var + eps)) + beta
    z = x_bn @ w_t + bias
    if residual:
        z = z + x_bn          # PyTorch module adds the post-BN x
    return z


# ---------------------------------- Main ----------------------------------- #
if __name__ == "__main__":
    key = jax.random.PRNGKey(0)

    def make_params(k, in_size, out_size):
        km, kv, kw, kb = jax.random.split(k, 4)
        gamma = jnp.full((1, in_size), 1.2, jnp.float32)
        beta = jnp.full((1, in_size), -0.1, jnp.float32)
        run_mean = 0.1 * jax.random.normal(km, (1, in_size), jnp.float32)
        run_var = jnp.abs(jax.random.normal(kv, (1, in_size), jnp.float32)) + 1.0
        w = 0.1 * jax.random.normal(kw, (out_size, in_size), jnp.float32)  # (out,in)
        bias = 0.1 * jax.random.normal(kb, (1, out_size), jnp.float32)
        return (gamma, beta, run_mean, run_var, jnp.transpose(w), bias)

    # (x_shape, out_size, residual_requested)
    tests = [
        ((250, 32), 32, True),     # 2-D, residual, batch not a multiple of 8
        ((4, 16, 48), 64, True),   # 3-D, in != out -> residual forced off
    ]

    keys = jax.random.split(key, 2 * len(tests))
    for t, (x_shape, out_size, res_req) in enumerate(tests):
        in_size = x_shape[-1]
        residual = res_req and (in_size == out_size)   # mirrors LinearBlock.__init__
        kx, kp = keys[2 * t], keys[2 * t + 1]
        x = jax.random.normal(kx, x_shape, jnp.float32)
        params = make_params(kp, in_size, out_size)

        ref = linear_block_reference(x, params, residual=residual)

        # f32 MXU path: exact-math check.
        out_f32 = jax.block_until_ready(
            linear_block_forward(x, params, residual=residual,
                                 use_bf16_matmul=False))
        assert out_f32.shape == ref.shape
        assert jnp.allclose(out_f32, ref, atol=1e-4, rtol=1e-4), \
            f"f32 kernel mismatch on test {t}"

        # bf16-fed MXU path (v6e/v7x fast path): looser tolerance.
        out_bf16 = jax.block_until_ready(
            linear_block_forward(x, params, residual=residual,
                                 use_bf16_matmul=True))
        assert jnp.allclose(out_bf16, ref, atol=5e-2, rtol=5e-2), \
            f"bf16 kernel mismatch on test {t}"

    print("KERNEL_OK")
</pallas_src>

<mosaic_0001>
module attributes {stable_mosaic.version = 11 : i64} {
  func.func @_linear_block_kernel(%arg0: i32, %arg1: i32, %arg2: memref<256x128xf32, #tpu.memory_space<vmem>>, %arg3: memref<128x128xf32, #tpu.memory_space<vmem>>, %arg4: memref<1x128xf32, #tpu.memory_space<vmem>>, %arg5: memref<256x128xf32, #tpu.memory_space<vmem>>, %arg6: memref<256x128xf32, #tpu.memory_space<vmem>>) attributes {dimension_semantics = [#tpu.dimension_semantics<parallel>, #tpu.dimension_semantics<arbitrary>], iteration_bounds = array<i64: 1, 1>, scalar_prefetch = 0 : i64, scratch_operands = 1 : i64, tpu.core_type = #tpu.core_type<tc>, window_params = [{transform_indices = @transform_0, window_bounds = array<i64: 256, 128>}, {transform_indices = @transform_1, window_bounds = array<i64: 128, 128>}, {pipeline_mode = #tpu.pipeline_mode<synchronous>, transform_indices = @transform_2, window_bounds = array<i64: 1, 128>}, {transform_indices = @transform_3, window_bounds = array<i64: 256, 128>}]} {
    %c0_i32 = arith.constant 0 : i32
    %0 = arith.cmpi eq, %arg1, %c0_i32 : i32
    %1 = arith.extui %0 : i1 to i32
    %c0_i32_0 = arith.constant 0 : i32
    %2 = arith.cmpi ne, %1, %c0_i32_0 : i32
    scf.if %2 {
      %cst_10 = arith.constant 0.000000e+00 : f32
      %12 = vector.broadcast %cst_10 : f32 to vector<256x128xf32>
      %c0_11 = arith.constant 0 : index
      %c0_12 = arith.constant 0 : index
      %13 = vector.load %arg6[%c0_11, %c0_12] : memref<256x128xf32, #tpu.memory_space<vmem>>, vector<256x128xf32>
      tpu.vector_store %arg6[%c0_11, %c0_12], %12 {strides = array<i32>} : memref<256x128xf32, #tpu.memory_space<vmem>>, vector<256x128xf32>,
    } else {
    }
    %c0 = arith.constant 0 : index
    %c0_1 = arith.constant 0 : index
    %3 = vector.load %arg2[%c0, %c0_1] : memref<256x128xf32, #tpu.memory_space<vmem>>, vector<256x128xf32>
    %c0_2 = arith.constant 0 : index
    %c0_3 = arith.constant 0 : index
    %4 = vector.load %arg6[%c0_2, %c0_3] : memref<256x128xf32, #tpu.memory_space<vmem>>, vector<256x128xf32>
    %c0_4 = arith.constant 0 : index
    %c0_5 = arith.constant 0 : index
    %5 = vector.load %arg3[%c0_4, %c0_5] : memref<128x128xf32, #tpu.memory_space<vmem>>, vector<128x128xf32>
    %cst = arith.constant dense<0.000000e+00> : vector<256x128xf32>
    %6 = tpu.matmul %3, %5, %cst {dimension_numbers = #tpu.dot_dimension_numbers<[1], [0], [0], [1], [0, 0, 1, 1], [], []>} : vector<256x128xf32>, vector<128x128xf32>, vector<256x128xf32> -> vector<256x128xf32>
    %7 = arith.addf %4, %6 : vector<256x128xf32>
    %c0_6 = arith.constant 0 : index
    %c0_7 = arith.constant 0 : index
    %8 = vector.load %arg6[%c0_6, %c0_7] : memref<256x128xf32, #tpu.memory_space<vmem>>, vector<256x128xf32>
    tpu.vector_store %arg6[%c0_6, %c0_7], %7 {strides = array<i32>} : memref<256x128xf32, #tpu.memory_space<vmem>>, vector<256x128xf32>,
    %c0_i32_8 = arith.constant 0 : i32
    %9 = arith.cmpi eq, %arg1, %c0_i32_8 : i32
    %10 = arith.extui %9 : i1 to i32
    %c0_i32_9 = arith.constant 0 : i32
    %11 = arith.cmpi ne, %10, %c0_i32_9 : i32
    scf.if %11 {
      %c0_10 = arith.constant 0 : index
      %c0_11 = arith.constant 0 : index
      %12 = vector.load %arg6[%c0_10, %c0_11] : memref<256x128xf32, #tpu.memory_space<vmem>>, vector<256x128xf32>
      %c0_12 = arith.constant 0 : index
      %c0_13 = arith.constant 0 : index
      %13 = vector.load %arg4[%c0_12, %c0_13] : memref<1x128xf32, #tpu.memory_space<vmem>>, vector<1x128xf32>
      %14 = vector.broadcast %13 : vector<1x128xf32> to vector<256x128xf32>
      %15 = arith.addf %12, %14 : vector<256x128xf32>
      %c0_14 = arith.constant 0 : index
      %c0_15 = arith.constant 0 : index
      %16 = vector.load %arg5[%c0_14, %c0_15] : memref<256x128xf32, #tpu.memory_space<vmem>>, vector<256x128xf32>
      tpu.vector_store %arg5[%c0_14, %c0_15], %15 {strides = array<i32>} : memref<256x128xf32, #tpu.memory_space<vmem>>, vector<256x128xf32>,
    } else {
    }
    return
  }
  func.func @transform_0(%arg0: i32, %arg1: i32) -> (i32, i32) {
    %c0_i32 = arith.constant 0 : i32
    return %arg0, %arg1 : i32, i32
  }
  func.func @transform_1(%arg0: i32, %arg1: i32) -> (i32, i32) {
    %c0_i32 = arith.constant 0 : i32
    %c0_i32_0 = arith.constant 0 : i32
    return %arg1, %c0_i32 : i32, i32
  }
  func.func @transform_2(%arg0: i32, %arg1: i32) -> (i32, i32) {
    %c0_i32 = arith.constant 0 : i32
    %c0_i32_0 = arith.constant 0 : i32
    %c0_i32_1 = arith.constant 0 : i32
    return %c0_i32, %c0_i32_0 : i32, i32
  }
  func.func @transform_3(%arg0: i32, %arg1: i32) -> (i32, i32) {
    %c0_i32 = arith.constant 0 : i32
    %c0_i32_0 = arith.constant 0 : i32
    return %arg0, %c0_i32 : i32, i32
  }
}

</mosaic_0001>

<llo_original>
// kernel: tpu_custom_call.1
$region0: #{tpu_custom_call.1}
  #allocation0 [shape = 'u32[]', space=smem, size = 0x4, offset = 0x4, fixed_abs, tag = 'smem constant byte address 0x4 - core index']
  #allocation1 [shape = 'u32[144,128]{1,0:T(1,128)}', space=vmem, size = 0x12000, scoped, tag = 'internal scratch']
  #allocation2 [shape = 'f32[256,128]{1,0:T(8,128)}', space=vmem, size = 0x20000, scoped, tag = 'scratch operand']
  %s0 = inlined_call_operand.hbm [shape: f32[256,128], index: 0, kind: input, shape index: {}]
  %s1 = inlined_call_operand.hbm [shape: f32[128,128], index: 1, kind: input, shape index: {}]
  %s2 = inlined_call_operand.vmem [shape: f32[1,128], index: 2, kind: input, shape index: {}]
  %s3 = inlined_call_operand.hbm [shape: f32[256,128], index: 3, kind: output, shape index: {}]
  %s4 = sld [smem:[#allocation0]]
  $region38: #{tpu_custom_call.1} parent=0
    _
  %s6 = ssub.s32 1, %s4
  %s7 = scalar_select 0, %s6, %s4
  $region1: #{tpu_custom_call.1} parent=0
    #allocation3 [shape = 'u8[131072]{0}', space=vmem, size = 0x20000, scoped, tag = 'input window, operand 0, single buffered']
    #allocation4 [shape = 's32[1]{0}', space=sflag, size = 0x4, scoped, tag = 'scoped memory for tpu_custom_call.1']
    #allocation5 [shape = 's32[1]{0}', space=sflag, size = 0x4, scoped, tag = 'scoped memory for tpu_custom_call.1']
    #allocation6 [shape = 'u8[65536]{0}', space=vmem, size = 0x10000, scoped, tag = 'input window, operand 1, single buffered']
    #allocation7 [shape = 's32[1]{0}', space=sflag, size = 0x4, scoped, tag = 'scoped memory for tpu_custom_call.1']
    #allocation8 [shape = 'u8[131072]{0}', space=vmem, size = 0x20000, scoped, tag = 'output window, operand 0, single buffered']
    %8 = vsyncpa [#allocation4], 0
    %9 = vsyncpa [#allocation7], 0
    %10 = vsyncpa [#allocation5], 0
    // Predicated region
    $region2: #{tpu_custom_call.1} parent=1 // pred_check
      _
    $region3: #{tpu_custom_call.1} parent=1 // pred_check_branch
      %12 = sbr.rel (0) target = $region5
    $region4: #{tpu_custom_call.1} parent=1 // pred_region
      %s14 = ssub.s32 4096, 4096
      %15 = vsyncadd [#allocation4], %s14
      %s16 = sshll.u32 [#allocation3], 4
      %s17 = int_to_ptr.vmem [resolvable:$true] %s16
      %22 = dma.hbm_to_vmem [thread:$0]  %s0, 4096, %s17, [#allocation4], 128, 128, 8
    $region5: #{tpu_custom_call.1} parent=1 // pred_fallthru
      _
    // Predicated region
    $region6: #{tpu_custom_call.1} parent=1 // pred_check
      _
    $region7: #{tpu_custom_call.1} parent=1 // pred_check_branch
      %24 = sbr.rel (0) target = $region9
    $region8: #{tpu_custom_call.1} parent=1 // pred_region
      %s26 = ssub.s32 2048, 2048
      %27 = vsyncadd [#allocation7], %s26
      %s28 = sshll.u32 [#allocation6], 4
      %s29 = int_to_ptr.vmem [resolvable:$true] %s28
      %34 = dma.hbm_to_vmem [thread:$0]  %s1, 2048, %s29, [#allocation7], 128, 128, 8
    $region9: #{tpu_custom_call.1} parent=1 // pred_fallthru
      _
    // Predicated region
    $region10: #{tpu_custom_call.1} parent=1 // pred_check
      _
    $region11: #{tpu_custom_call.1} parent=1 // pred_check_branch
      %36 = sbr.rel (0) target = $region13
    $region12: #{tpu_custom_call.1} parent=1 // pred_region
      _
    $region13: #{tpu_custom_call.1} parent=1 // pred_fallthru
      _
    // Predicated region
    $region14: #{tpu_custom_call.1} parent=1 // pred_check
      _
    $region15: #{tpu_custom_call.1} parent=1 // pred_check_branch
      %38 = sbr.rel (0) target = $region17
    $region16: #{tpu_custom_call.1} parent=1 // pred_region
      %39 = dma.done [#allocation4], 4096
    $region17: #{tpu_custom_call.1} parent=1 // pred_fallthru
      _
    // Predicated region
    $region18: #{tpu_custom_call.1} parent=1 // pred_check
      _
    $region19: #{tpu_custom_call.1} parent=1 // pred_check_branch
      %41 = sbr.rel (0) target = $region21
    $region20: #{tpu_custom_call.1} parent=1 // pred_region
      %42 = dma.done [#allocation7], 2048
    $region21: #{tpu_custom_call.1} parent=1 // pred_fallthru
      _
    %p43 = scmp.eq.s32.totalorder 0, 0
    // Predicated region
    $region22: #{tpu_custom_call.1} parent=1 // pred_check
      %p44 = pneg %p43
    $region23: #{tpu_custom_call.1} parent=1 // pred_check_branch
      %46 = sbr.rel (%p44) target = $region25
    $region24: #{tpu_custom_call.1} parent=1 // pred_region
      %47 = vst [vmem:[#allocation2] sm:$0xff] 0.0
      %48 = vst [vmem:[#allocation2 + $0x8] sm:$0xff] 0.0
      %49 = vst [vmem:[#allocation2 + $0x10] sm:$0xff] 0.0
      %50 = vst [vmem:[#allocation2 + $0x18] sm:$0xff] 0.0
      %51 = vst [vmem:[#allocation2 + $0x20] sm:$0xff] 0.0
      %52 = vst [vmem:[#allocation2 + $0x28] sm:$0xff] 0.0
      %53 = vst [vmem:[#allocation2 + $0x30] sm:$0xff] 0.0
      %54 = vst [vmem:[#allocation2 + $0x38] sm:$0xff] 0.0
      %55 = vst [vmem:[#allocation2 + $0x40] sm:$0xff] 0.0
      %56 = vst [vmem:[#allocation2 + $0x48] sm:$0xff] 0.0
      %57 = vst [vmem:[#allocation2 + $0x50] sm:$0xff] 0.0
      %58 = vst [vmem:[#allocation2 + $0x58] sm:$0xff] 0.0
      %59 = vst [vmem:[#allocation2 + $0x60] sm:$0xff] 0.0
      %60 = vst [vmem:[#allocation2 + $0x68] sm:$0xff] 0.0
      %61 = vst [vmem:[#allocation2 + $0x70] sm:$0xff] 0.0
      %62 = vst [vmem:[#allocation2 + $0x78] sm:$0xff] 0.0
      %63 = vst [vmem:[#allocation2 + $0x80] sm:$0xff] 0.0
      %64 = vst [vmem:[#allocation2 + $0x88] sm:$0xff] 0.0
      %65 = vst [vmem:[#allocation2 + $0x90] sm:$0xff] 0.0
      %66 = vst [vmem:[#allocation2 + $0x98] sm:$0xff] 0.0
      %67 = vst [vmem:[#allocation2 + $0xa0] sm:$0xff] 0.0
      %68 = vst [vmem:[#allocation2 + $0xa8] sm:$0xff] 0.0
      %69 = vst [vmem:[#allocation2 + $0xb0] sm:$0xff] 0.0
      %70 = vst [vmem:[#allocation2 + $0xb8] sm:$0xff] 0.0
      %71 = vst [vmem:[#allocation2 + $0xc0] sm:$0xff] 0.0
      %72 = vst [vmem:[#allocation2 + $0xc8] sm:$0xff] 0.0
      %73 = vst [vmem:[#allocation2 + $0xd0] sm:$0xff] 0.0
      %74 = vst [vmem:[#allocation2 + $0xd8] sm:$0xff] 0.0
      %75 = vst [vmem:[#allocation2 + $0xe0] sm:$0xff] 0.0
      %76 = vst [vmem:[#allocation2 + $0xe8] sm:$0xff] 0.0
      %77 = vst [vmem:[#allocation2 + $0xf0] sm:$0xff] 0.0
      %78 = vst [vmem:[#allocation2 + $0xf8] sm:$0xff] 0.0
    $region25: #{tpu_custom_call.1} parent=1 // pred_fallthru
      _
    %v79 = vld [vmem:[#allocation3] sm:$0xff]
    %v80 = vld [vmem:[#allocation3 + $0x8] sm:$0xff]
    %v81 = vld [vmem:[#allocation3 + $0x10] sm:$0xff]
    %v82 = vld [vmem:[#allocation3 + $0x18] sm:$0xff]
    %v83 = vld [vmem:[#allocation3 + $0x20] sm:$0xff]
    %v84 = vld [vmem:[#allocation3 + $0x28] sm:$0xff]
    %v85 = vld [vmem:[#allocation3 + $0x30] sm:$0xff]
    %v86 = vld [vmem:[#allocation3 + $0x38] sm:$0xff]
    %v87 = vld [vmem:[#allocation3 + $0x40] sm:$0xff]
    %v88 = vld [vmem:[#allocation3 + $0x48] sm:$0xff]
    %v89 = vld [vmem:[#allocation3 + $0x50] sm:$0xff]
    %v90 = vld [vmem:[#allocation3 + $0x58] sm:$0xff]
    %v91 = vld [vmem:[#allocation3 + $0x60] sm:$0xff]
    %v92 = vld [vmem:[#allocation3 + $0x68] sm:$0xff]
    %v93 = vld [vmem:[#allocation3 + $0x70] sm:$0xff]
    %v94 = vld [vmem:[#allocation3 + $0x78] sm:$0xff]
    %v95 = vld [vmem:[#allocation3 + $0x80] sm:$0xff]
    %v96 = vld [vmem:[#allocation3 + $0x88] sm:$0xff]
    %v97 = vld [vmem:[#allocation3 + $0x90] sm:$0xff]
    %v98 = vld [vmem:[#allocation3 + $0x98] sm:$0xff]
    %v99 = vld [vmem:[#allocation3 + $0xa0] sm:$0xff]
    %v100 = vld [vmem:[#allocation3 + $0xa8] sm:$0xff]
    %v101 = vld [vmem:[#allocation3 + $0xb0] sm:$0xff]
    %v102 = vld [vmem:[#allocation3 + $0xb8] sm:$0xff]
    %v103 = vld [vmem:[#allocation3 + $0xc0] sm:$0xff]
    %v104 = vld [vmem:[#allocation3 + $0xc8] sm:$0xff]
    %v105 = vld [vmem:[#allocation3 + $0xd0] sm:$0xff]
    %v106 = vld [vmem:[#allocation3 + $0xd8] sm:$0xff]
    %v107 = vld [vmem:[#allocation3 + $0xe0] sm:$0xff]
    %v108 = vld [vmem:[#allocation3 + $0xe8] sm:$0xff]
    %v109 = vld [vmem:[#allocation3 + $0xf0] sm:$0xff]
    %v110 = vld [vmem:[#allocation3 + $0xf8] sm:$0xff]
    %v111 = vld [vmem:[#allocation2] sm:$0xff]
    %v112 = vld [vmem:[#allocation2 + $0x8] sm:$0xff]
    %v113 = vld [vmem:[#allocation2 + $0x10] sm:$0xff]
    %v114 = vld [vmem:[#allocation2 + $0x18] sm:$0xff]
    %v115 = vld [vmem:[#allocation2 + $0x20] sm:$0xff]
    %v116 = vld [vmem:[#allocation2 + $0x28] sm:$0xff]
    %v117 = vld [vmem:[#allocation2 + $0x30] sm:$0xff]
    %v118 = vld [vmem:[#allocation2 + $0x38] sm:$0xff]
    %v119 = vld [vmem:[#allocation2 + $0x40] sm:$0xff]
    %v120 = vld [vmem:[#allocation2 + $0x48] sm:$0xff]
    %v121 = vld [vmem:[#allocation2 + $0x50] sm:$0xff]
    %v122 = vld [vmem:[#allocation2 + $0x58] sm:$0xff]
    %v123 = vld [vmem:[#allocation2 + $0x60] sm:$0xff]
    %v124 = vld [vmem:[#allocation2 + $0x68] sm:$0xff]
    %v125 = vld [vmem:[#allocation2 + $0x70] sm:$0xff]
    %v126 = vld [vmem:[#allocation2 + $0x78] sm:$0xff]
    %v127 = vld [vmem:[#allocation2 + $0x80] sm:$0xff]
    %v128 = vld [vmem:[#allocation2 + $0x88] sm:$0xff]
    %v129 = vld [vmem:[#allocation2 + $0x90] sm:$0xff]
    %v130 = vld [vmem:[#allocation2 + $0x98] sm:$0xff]
    %v131 = vld [vmem:[#allocation2 + $0xa0] sm:$0xff]
    %v132 = vld [vmem:[#allocation2 + $0xa8] sm:$0xff]
    %v133 = vld [vmem:[#allocation2 + $0xb0] sm:$0xff]
    %v134 = vld [vmem:[#allocation2 + $0xb8] sm:$0xff]
    %v135 = vld [vmem:[#allocation2 + $0xc0] sm:$0xff]
    %v136 = vld [vmem:[#allocation2 + $0xc8] sm:$0xff]
    %v137 = vld [vmem:[#allocation2 + $0xd0] sm:$0xff]
    %v138 = vld [vmem:[#allocation2 + $0xd8] sm:$0xff]
    %v139 = vld [vmem:[#allocation2 + $0xe0] sm:$0xff]
    %v140 = vld [vmem:[#allocation2 + $0xe8] sm:$0xff]
    %v141 = vld [vmem:[#allocation2 + $0xf0] sm:$0xff]
    %v142 = vld [vmem:[#allocation2 + $0xf8] sm:$0xff]
    %v143 = vld [vmem:[#allocation6] sm:$0xff]
    %v144 = vld [vmem:[#allocation6 + $0x8] sm:$0xff]
    %v145 = vld [vmem:[#allocation6 + $0x10] sm:$0xff]
    %v146 = vld [vmem:[#allocation6 + $0x18] sm:$0xff]
    %v147 = vld [vmem:[#allocation6 + $0x20] sm:$0xff]
    %v148 = vld [vmem:[#allocation6 + $0x28] sm:$0xff]
    %v149 = vld [vmem:[#allocation6 + $0x30] sm:$0xff]
    %v150 = vld [vmem:[#allocation6 + $0x38] sm:$0xff]
    %v151 = vld [vmem:[#allocation6 + $0x40] sm:$0xff]
    %v152 = vld [vmem:[#allocation6 + $0x48] sm:$0xff]
    %v153 = vld [vmem:[#allocation6 + $0x50] sm:$0xff]
    %v154 = vld [vmem:[#allocation6 + $0x58] sm:$0xff]
    %v155 = vld [vmem:[#allocation6 + $0x60] sm:$0xff]
    %v156 = vld [vmem:[#allocation6 + $0x68] sm:$0xff]
    %v157 = vld [vmem:[#allocation6 + $0x70] sm:$0xff]
    %v158 = vld [vmem:[#allocation6 + $0x78] sm:$0xff]
    %159 = vmatprep.subr.mxu0 0.0
    %160 = vmatpush1.msra.mxu0 %v143
    %161 = vmatprep.subr.mxu0 0.0
    %162 = vmatpush1.msra.mxu0 %v144
    %163 = vmatprep.subr.mxu0 0.0
    %164 = vmatpush1.msra.mxu0 %v145
    %165 = vmatprep.subr.mxu0 0.0
    %166 = vmatpush1.msra.mxu0 %v146
    %167 = vmatprep.subr.mxu0 0.0
    %168 = vmatpush1.msra.mxu0 %v147
    %169 = vmatprep.subr.mxu0 0.0
    %170 = vmatpush1.msra.mxu0 %v148
    %171 = vmatprep.subr.mxu0 0.0
    %172 = vmatpush1.msra.mxu0 %v149
    %173 = vmatprep.subr.mxu0 0.0
    %174 = vmatpush1.msra.mxu0 %v150
    %175 = vmatprep.subr.mxu0 0.0
    %176 = vmatpush1.msra.mxu0 %v151
    %177 = vmatprep.subr.mxu0 0.0
    %178 = vmatpush1.msra.mxu0 %v152
    %179 = vmatprep.subr.mxu0 0.0
    %180 = vmatpush1.msra.mxu0 %v153
    %181 = vmatprep.subr.mxu0 0.0
    %182 = vmatpush1.msra.mxu0 %v154
    %183 = vmatprep.subr.mxu0 0.0
    %184 = vmatpush1.msra.mxu0 %v155
    %185 = vmatprep.subr.mxu0 0.0
    %186 = vmatpush1.msra.mxu0 %v156
    %187 = vmatprep.subr.mxu0 0.0
    %188 = vmatpush1.msra.mxu0 %v157
    %189 = vmatprep.subr.mxu0 0.0
    %190 = vmatpush1.msra.mxu0 %v158
    %191 = vmatprep.subr.mxu0 0.0
    %192 = vmatpush1.msra.mxu0 0.0
    %193 = vmatprep.subr.mxu0 0.0
    %194 = vmatpush1.msra.mxu0 0.0
    %195 = vmatprep.subr.mxu0 0.0
    %196 = vmatpush1.msra.mxu0 0.0
    %197 = vmatprep.subr.mxu0 0.0
    %198 = vmatpush1.msra.mxu0 0.0
    %199 = vmatprep.subr.mxu0 0.0
    %200 = vmatpush1.msra.mxu0 0.0
    %201 = vmatprep.subr.mxu0 0.0
    %202 = vmatpush1.msra.mxu0 0.0
    %203 = vmatprep.subr.mxu0 0.0
    %204 = vmatpush1.msra.mxu0 0.0
    %205 = vmatprep.subr.mxu0 0.0
    %206 = vmatpush1.msra.mxu0 0.0
    %207 = vmatprep.subr.mxu0 0.0
    %208 = vmatpush1.msra.mxu0 0.0
    %209 = vmatprep.subr.mxu0 0.0
    %210 = vmatpush1.msra.mxu0 0.0
    %211 = vmatprep.subr.mxu0 0.0
    %212 = vmatpush1.msra.mxu0 0.0
    %213 = vmatprep.subr.mxu0 0.0
    %214 = vmatpush1.msra.mxu0 0.0
    %215 = vmatprep.subr.mxu0 0.0
    %216 = vmatpush1.msra.mxu0 0.0
    %217 = vmatprep.subr.mxu0 0.0
    %218 = vmatpush1.msra.mxu0 0.0
    %219 = vmatprep.subr.mxu0 0.0
    %220 = vmatpush1.msra.mxu0 0.0
    %221 = vmatprep.subr.mxu0 0.0
    %222 = vmatpush1.msra.mxu0 0.0
    %223 = vmatprep.mubr.f32.mxu0 0.0
    %224 = vmatmul.mubr.f32.gmra.mrb[0].mxu0 %v79
    %v225 = vpop.f32.mrb[0].mxu0
    %v226 = vadd.f32 0.0, %v225
    %v227 = vpop.f32.mrb[0].mxu0
    %228 = vmatprep.mubr.f32.mxu0 0.0
    %229 = vmatmul.mubr.f32.gmra.mrb[0].mxu0 %v80
    %v230 = vpop.f32.mrb[0].mxu0
    %v231 = vadd.f32 0.0, %v230
    %v232 = vpop.f32.mrb[0].mxu0
    %233 = vmatprep.mubr.f32.mxu0 0.0
    %234 = vmatmul.mubr.f32.gmra.mrb[0].mxu0 %v81
    %v235 = vpop.f32.mrb[0].mxu0
    %v236 = vadd.f32 0.0, %v235
    %v237 = vpop.f32.mrb[0].mxu0
    %238 = vmatprep.mubr.f32.mxu0 0.0
    %239 = vmatmul.mubr.f32.gmra.mrb[0].mxu0 %v82
    %v240 = vpop.f32.mrb[0].mxu0
    %v241 = vadd.f32 0.0, %v240
    %v242 = vpop.f32.mrb[0].mxu0
    %243 = vmatprep.mubr.f32.mxu0 0.0
    %244 = vmatmul.mubr.f32.gmra.mrb[0].mxu0 %v83
    %v245 = vpop.f32.mrb[0].mxu0
    %v246 = vadd.f32 0.0, %v245
    %v247 = vpop.f32.mrb[0].mxu0
    %248 = vmatprep.mubr.f32.mxu0 0.0
    %249 = vmatmul.mubr.f32.gmra.mrb[0].mxu0 %v84
    %v250 = vpop.f32.mrb[0].mxu0
    %v251 = vadd.f32 0.0, %v250
    %v252 = vpop.f32.mrb[0].mxu0
    %253 = vmatprep.mubr.f32.mxu0 0.0
    %254 = vmatmul.mubr.f32.gmra.mrb[0].mxu0 %v85
    %v255 = vpop.f32.mrb[0].mxu0
    %v256 = vadd.f32 0.0, %v255
    %v257 = vpop.f32.mrb[0].mxu0
    %258 = vmatprep.mubr.f32.mxu0 0.0
    %259 = vmatmul.mubr.f32.gmra.mrb[0].mxu0 %v86
    %v260 = vpop.f32.mrb[0].mxu0
    %v261 = vadd.f32 0.0, %v260
    %v262 = vpop.f32.mrb[0].mxu0
    %263 = vmatprep.mubr.f32.mxu0 0.0
    %264 = vmatmul.mubr.f32.gmra.mrb[0].mxu0 %v87
    %v265 = vpop.f32.mrb[0].mxu0
    %v266 = vadd.f32 0.0, %v265
    %v267 = vpop.f32.mrb[0].mxu0
    %268 = vmatprep.mubr.f32.mxu0 0.0
    %269 = vmatmul.mubr.f32.gmra.mrb[0].mxu0 %v88
    %v270 = vpop.f32.mrb[0].mxu0
    %v271 = vadd.f32 0.0, %v270
    %v272 = vpop.f32.mrb[0].mxu0
    %273 = vmatprep.mubr.f32.mxu0 0.0
    %274 = vmatmul.mubr.f32.gmra.mrb[0].mxu0 %v89
    %v275 = vpop.f32.mrb[0].mxu0
    %v276 = vadd.f32 0.0, %v275
    %v277 = vpop.f32.mrb[0].mxu0
    %278 = vmatprep.mubr.f32.mxu0 0.0
    %279 = vmatmul.mubr.f32.gmra.mrb[0].mxu0 %v90
    %v280 = vpop.f32.mrb[0].mxu0
    %v281 = vadd.f32 0.0, %v280
    %v282 = vpop.f32.mrb[0].mxu0
    %283 = vmatprep.mubr.f32.mxu0 0.0
    %284 = vmatmul.mubr.f32.gmra.mrb[0].mxu0 %v91
    %v285 = vpop.f32.mrb[0].mxu0
    %v286 = vadd.f32 0.0, %v285
    %v287 = vpop.f32.mrb[0].mxu0
    %288 = vmatprep.mubr.f32.mxu0 0.0
    %289 = vmatmul.mubr.f32.gmra.mrb[0].mxu0 %v92
    %v290 = vpop.f32.mrb[0].mxu0
    %v291 = vadd.f32 0.0, %v290
    %v292 = vpop.f32.mrb[0].mxu0
    %293 = vmatprep.mubr.f32.mxu0 0.0
    %294 = vmatmul.mubr.f32.gmra.mrb[0].mxu0 %v93
    %v295 = vpop.f32.mrb[0].mxu0
    %v296 = vadd.f32 0.0, %v295
    %v297 = vpop.f32.mrb[0].mxu0
    %298 = vmatprep.mubr.f32.mxu0 0.0
    %299 = vmatmul.mubr.f32.gmra.mrb[0].mxu0 %v94
    %v300 = vpop.f32.mrb[0].mxu0
    %v301 = vadd.f32 0.0, %v300
    %v302 = vpop.f32.mrb[0].mxu0
    %303 = vmatprep.mubr.f32.mxu0 0.0
    %304 = vmatmul.mubr.f32.gmra.mrb[0].mxu0 %v95
    %v305 = vpop.f32.mrb[0].mxu0
    %v306 = vadd.f32 0.0, %v305
    %v307 = vpop.f32.mrb[0].mxu0
    %308 = vmatprep.mubr.f32.mxu0 0.0
    %309 = vmatmul.mubr.f32.gmra.mrb[0].mxu0 %v96
    %v310 = vpop.f32.mrb[0].mxu0
    %v311 = vadd.f32 0.0, %v310
    %v312 = vpop.f32.mrb[0].mxu0
    %313 = vmatprep.mubr.f32.mxu0 0.0
    %314 = vmatmul.mubr.f32.gmra.mrb[0].mxu0 %v97
    %v315 = vpop.f32.mrb[0].mxu0
    %v316 = vadd.f32 0.0, %v315
    %v317 = vpop.f32.mrb[0].mxu0
    %318 = vmatprep.mubr.f32.mxu0 0.0
    %319 = vmatmul.mubr.f32.gmra.mrb[0].mxu0 %v98
    %v320 = vpop.f32.mrb[0].mxu0
    %v321 = vadd.f32 0.0, %v320
    %v322 = vpop.f32.mrb[0].mxu0
    %323 = vmatprep.mubr.f32.mxu0 0.0
    %324 = vmatmul.mubr.f32.gmra.mrb[0].mxu0 %v99
    %v325 = vpop.f32.mrb[0].mxu0
    %v326 = vadd.f32 0.0, %v325
    %v327 = vpop.f32.mrb[0].mxu0
    %328 = vmatprep.mubr.f32.mxu0 0.0
    %329 = vmatmul.mubr.f32.gmra.mrb[0].mxu0 %v100
    %v330 = vpop.f32.mrb[0].mxu0
    %v331 = vadd.f32 0.0, %v330
    %v332 = vpop.f32.mrb[0].mxu0
    %333 = vmatprep.mubr.f32.mxu0 0.0
    %334 = vmatmul.mubr.f32.gmra.mrb[0].mxu0 %v101
    %v335 = vpop.f32.mrb[0].mxu0
    %v336 = vadd.f32 0.0, %v335
    %v337 = vpop.f32.mrb[0].mxu0
    %338 = vmatprep.mubr.f32.mxu0 0.0
    %339 = vmatmul.mubr.f32.gmra.mrb[0].mxu0 %v102
    %v340 = vpop.f32.mrb[0].mxu0
    %v341 = vadd.f32 0.0, %v340
    %v342 = vpop.f32.mrb[0].mxu0
    %343 = vmatprep.mubr.f32.mxu0 0.0
    %344 = vmatmul.mubr.f32.gmra.mrb[0].mxu0 %v103
    %v345 = vpop.f32.mrb[0].mxu0
    %v346 = vadd.f32 0.0, %v345
    %v347 = vpop.f32.mrb[0].mxu0
    %348 = vmatprep.mubr.f32.mxu0 0.0
    %349 = vmatmul.mubr.f32.gmra.mrb[0].mxu0 %v104
    %v350 = vpop.f32.mrb[0].mxu0
    %v351 = vadd.f32 0.0, %v350
    %v352 = vpop.f32.mrb[0].mxu0
    %353 = vmatprep.mubr.f32.mxu0 0.0
    %354 = vmatmul.mubr.f32.gmra.mrb[0].mxu0 %v105
    %v355 = vpop.f32.mrb[0].mxu0
    %v356 = vadd.f32 0.0, %v355
    %v357 = vpop.f32.mrb[0].mxu0
    %358 = vmatprep.mubr.f32.mxu0 0.0
    %359 = vmatmul.mubr.f32.gmra.mrb[0].mxu0 %v106
    %v360 = vpop.f32.mrb[0].mxu0
    %v361 = vadd.f32 0.0, %v360
    %v362 = vpop.f32.mrb[0].mxu0
    %363 = vmatprep.mubr.f32.mxu0 0.0
    %364 = vmatmul.mubr.f32.gmra.mrb[0].mxu0 %v107
    %v365 = vpop.f32.mrb[0].mxu0
    %v366 = vadd.f32 0.0, %v365
    %v367 = vpop.f32.mrb[0].mxu0
    %368 = vmatprep.mubr.f32.mxu0 0.0
    %369 = vmatmul.mubr.f32.gmra.mrb[0].mxu0 %v108
    %v370 = vpop.f32.mrb[0].mxu0
    %v371 = vadd.f32 0.0, %v370
    %v372 = vpop.f32.mrb[0].mxu0
    %373 = vmatprep.mubr.f32.mxu0 0.0
    %374 = vmatmul.mubr.f32.gmra.mrb[0].mxu0 %v109
    %v375 = vpop.f32.mrb[0].mxu0
    %v376 = vadd.f32 0.0, %v375
    %v377 = vpop.f32.mrb[0].mxu0
    %378 = vmatprep.mubr.f32.mxu0 0.0
    %379 = vmatmul.mubr.f32.gmra.mrb[0].mxu0 %v110
    %v380 = vpop.f32.mrb[0].mxu0
    %v381 = vadd.f32 0.0, %v380
    %v382 = vpop.f32.mrb[0].mxu0
    %383 = vdwg.mxu0
    %v384 = vadd.f32 %v111, %v226
    %v385 = vadd.f32 %v112, %v231
    %v386 = vadd.f32 %v113, %v236
    %v387 = vadd.f32 %v114, %v241
    %v388 = vadd.f32 %v115, %v246
    %v389 = vadd.f32 %v116, %v251
    %v390 = vadd.f32 %v117, %v256
    %v391 = vadd.f32 %v118, %v261
    %v392 = vadd.f32 %v119, %v266
    %v393 = vadd.f32 %v120, %v271
    %v394 = vadd.f32 %v121, %v276
    %v395 = vadd.f32 %v122, %v281
    %v396 = vadd.f32 %v123, %v286
    %v397 = vadd.f32 %v124, %v291
    %v398 = vadd.f32 %v125, %v296
    %v399 = vadd.f32 %v126, %v301
    %v400 = vadd.f32 %v127, %v306
    %v401 = vadd.f32 %v128, %v311
    %v402 = vadd.f32 %v129, %v316
    %v403 = vadd.f32 %v130, %v321
    %v404 = vadd.f32 %v131, %v326
    %v405 = vadd.f32 %v132, %v331
    %v406 = vadd.f32 %v133, %v336
    %v407 = vadd.f32 %v134, %v341
    %v408 = vadd.f32 %v135, %v346
    %v409 = vadd.f32 %v136, %v351
    %v410 = vadd.f32 %v137, %v356
    %v411 = vadd.f32 %v138, %v361
    %v412 = vadd.f32 %v139, %v366
    %v413 = vadd.f32 %v140, %v371
    %v414 = vadd.f32 %v141, %v376
    %v415 = vadd.f32 %v142, %v381
    %416 = vst [vmem:[#allocation2] sm:$0xff] %v384
    %417 = vst [vmem:[#allocation2 + $0x8] sm:$0xff] %v385
    %418 = vst [vmem:[#allocation2 + $0x10] sm:$0xff] %v386
    %419 = vst [vmem:[#allocation2 + $0x18] sm:$0xff] %v387
    %420 = vst [vmem:[#allocation2 + $0x20] sm:$0xff] %v388
    %421 = vst [vmem:[#allocation2 + $0x28] sm:$0xff] %v389
    %422 = vst [vmem:[#allocation2 + $0x30] sm:$0xff] %v390
    %423 = vst [vmem:[#allocation2 + $0x38] sm:$0xff] %v391
    %424 = vst [vmem:[#allocation2 + $0x40] sm:$0xff] %v392
    %425 = vst [vmem:[#allocation2 + $0x48] sm:$0xff] %v393
    %426 = vst [vmem:[#allocation2 + $0x50] sm:$0xff] %v394
    %427 = vst [vmem:[#allocation2 + $0x58] sm:$0xff] %v395
    %428 = vst [vmem:[#allocation2 + $0x60] sm:$0xff] %v396
    %429 = vst [vmem:[#allocation2 + $0x68] sm:$0xff] %v397
    %430 = vst [vmem:[#allocation2 + $0x70] sm:$0xff] %v398
    %431 = vst [vmem:[#allocation2 + $0x78] sm:$0xff] %v399
    %432 = vst [vmem:[#allocation2 + $0x80] sm:$0xff] %v400
    %433 = vst [vmem:[#allocation2 + $0x88] sm:$0xff] %v401
    %434 = vst [vmem:[#allocation2 + $0x90] sm:$0xff] %v402
    %435 = vst [vmem:[#allocation2 + $0x98] sm:$0xff] %v403
    %436 = vst [vmem:[#allocation2 + $0xa0] sm:$0xff] %v404
    %437 = vst [vmem:[#allocation2 + $0xa8] sm:$0xff] %v405
    %438 = vst [vmem:[#allocation2 + $0xb0] sm:$0xff] %v406
    %439 = vst [vmem:[#allocation2 + $0xb8] sm:$0xff] %v407
    %440 = vst [vmem:[#allocation2 + $0xc0] sm:$0xff] %v408
    %441 = vst [vmem:[#allocation2 + $0xc8] sm:$0xff] %v409
    %442 = vst [vmem:[#allocation2 + $0xd0] sm:$0xff] %v410
    %443 = vst [vmem:[#allocation2 + $0xd8] sm:$0xff] %v411
    %444 = vst [vmem:[#allocation2 + $0xe0] sm:$0xff] %v412
    %445 = vst [vmem:[#allocation2 + $0xe8] sm:$0xff] %v413
    %446 = vst [vmem:[#allocation2 + $0xf0] sm:$0xff] %v414
    %447 = vst [vmem:[#allocation2 + $0xf8] sm:$0xff] %v415
    // Predicated region
    $region26: #{tpu_custom_call.1} parent=1 // pred_check
      %p448 = pneg %p43
    $region27: #{tpu_custom_call.1} parent=1 // pred_check_branch
      %450 = sbr.rel (%p448) target = $region29
    $region28: #{tpu_custom_call.1} parent=1 // pred_region
      %v451 = vld [vmem:[#allocation2] sm:$0xff]
      %v452 = vld [vmem:[#allocation2 + $0x8] sm:$0xff]
      %v453 = vld [vmem:[#allocation2 + $0x10] sm:$0xff]
      %v454 = vld [vmem:[#allocation2 + $0x18] sm:$0xff]
      %v455 = vld [vmem:[#allocation2 + $0x20] sm:$0xff]
      %v456 = vld [vmem:[#allocation2 + $0x28] sm:$0xff]
      %v457 = vld [vmem:[#allocation2 + $0x30] sm:$0xff]
      %v458 = vld [vmem:[#allocation2 + $0x38] sm:$0xff]
      %v459 = vld [vmem:[#allocation2 + $0x40] sm:$0xff]
      %v460 = vld [vmem:[#allocation2 + $0x48] sm:$0xff]
      %v461 = vld [vmem:[#allocation2 + $0x50] sm:$0xff]
      %v462 = vld [vmem:[#allocation2 + $0x58] sm:$0xff]
      %v463 = vld [vmem:[#allocation2 + $0x60] sm:$0xff]
      %v464 = vld [vmem:[#allocation2 + $0x68] sm:$0xff]
      %v465 = vld [vmem:[#allocation2 + $0x70] sm:$0xff]
      %v466 = vld [vmem:[#allocation2 + $0x78] sm:$0xff]
      %v467 = vld [vmem:[#allocation2 + $0x80] sm:$0xff]
      %v468 = vld [vmem:[#allocation2 + $0x88] sm:$0xff]
      %v469 = vld [vmem:[#allocation2 + $0x90] sm:$0xff]
      %v470 = vld [vmem:[#allocation2 + $0x98] sm:$0xff]
      %v471 = vld [vmem:[#allocation2 + $0xa0] sm:$0xff]
      %v472 = vld [vmem:[#allocation2 + $0xa8] sm:$0xff]
      %v473 = vld [vmem:[#allocation2 + $0xb0] sm:$0xff]
      %v474 = vld [vmem:[#allocation2 + $0xb8] sm:$0xff]
      %v475 = vld [vmem:[#allocation2 + $0xc0] sm:$0xff]
      %v476 = vld [vmem:[#allocation2 + $0xc8] sm:$0xff]
      %v477 = vld [vmem:[#allocation2 + $0xd0] sm:$0xff]
      %v478 = vld [vmem:[#allocation2 + $0xd8] sm:$0xff]
      %v479 = vld [vmem:[#allocation2 + $0xe0] sm:$0xff]
      %v480 = vld [vmem:[#allocation2 + $0xe8] sm:$0xff]
      %v481 = vld [vmem:[#allocation2 + $0xf0] sm:$0xff]
      %v482 = vld [vmem:[#allocation2 + $0xf8] sm:$0xff]
      %v483 = vld [vmem:[%s2] sm:$0x1]
      %v485 = vlaneseq
      %v486 = vshrl.u32 %v485, 7
      %v487 = vsub.s32 0, %v486
      %v488 = vrot.slane %v483, %v487
      %v490 = vadd.f32 %v451, %v488
      %v491 = vadd.f32 %v452, %v488
      %v492 = vadd.f32 %v453, %v488
      %v493 = vadd.f32 %v454, %v488
      %v494 = vadd.f32 %v455, %v488
      %v495 = vadd.f32 %v456, %v488
      %v496 = vadd.f32 %v457, %v488
      %v497 = vadd.f32 %v458, %v488
      %v498 = vadd.f32 %v459, %v488
      %v499 = vadd.f32 %v460, %v488
      %v500 = vadd.f32 %v461, %v488
      %v501 = vadd.f32 %v462, %v488
      %v502 = vadd.f32 %v463, %v488
      %v503 = vadd.f32 %v464, %v488
      %v504 = vadd.f32 %v465, %v488
      %v505 = vadd.f32 %v466, %v488
      %v506 = vadd.f32 %v467, %v488
      %v507 = vadd.f32 %v468, %v488
      %v508 = vadd.f32 %v469, %v488
      %v509 = vadd.f32 %v470, %v488
      %v510 = vadd.f32 %v471, %v488
      %v511 = vadd.f32 %v472, %v488
      %v512 = vadd.f32 %v473, %v488
      %v513 = vadd.f32 %v474, %v488
      %v514 = vadd.f32 %v475, %v488
      %v515 = vadd.f32 %v476, %v488
      %v516 = vadd.f32 %v477, %v488
      %v517 = vadd.f32 %v478, %v488
      %v518 = vadd.f32 %v479, %v488
      %v519 = vadd.f32 %v480, %v488
      %v520 = vadd.f32 %v481, %v488
      %v521 = vadd.f32 %v482, %v488
      %522 = vst [vmem:[#allocation8] sm:$0xff] %v490
      %523 = vst [vmem:[#allocation8 + $0x8] sm:$0xff] %v491
      %524 = vst [vmem:[#allocation8 + $0x10] sm:$0xff] %v492
      %525 = vst [vmem:[#allocation8 + $0x18] sm:$0xff] %v493
      %526 = vst [vmem:[#allocation8 + $0x20] sm:$0xff] %v494
      %527 = vst [vmem:[#allocation8 + $0x28] sm:$0xff] %v495
      %528 = vst [vmem:[#allocation8 + $0x30] sm:$0xff] %v496
      %529 = vst [vmem:[#allocation8 + $0x38] sm:$0xff] %v497
      %530 = vst [vmem:[#allocation8 + $0x40] sm:$0xff] %v498
      %531 = vst [vmem:[#allocation8 + $0x48] sm:$0xff] %v499
      %532 = vst [vmem:[#allocation8 + $0x50] sm:$0xff] %v500
      %533 = vst [vmem:[#allocation8 + $0x58] sm:$0xff] %v501
      %534 = vst [vmem:[#allocation8 + $0x60] sm:$0xff] %v502
      %535 = vst [vmem:[#allocation8 + $0x68] sm:$0xff] %v503
      %536 = vst [vmem:[#allocation8 + $0x70] sm:$0xff] %v504
      %537 = vst [vmem:[#allocation8 + $0x78] sm:$0xff] %v505
      %538 = vst [vmem:[#allocation8 + $0x80] sm:$0xff] %v506
      %539 = vst [vmem:[#allocation8 + $0x88] sm:$0xff] %v507
      %540 = vst [vmem:[#allocation8 + $0x90] sm:$0xff] %v508
      %541 = vst [vmem:[#allocation8 + $0x98] sm:$0xff] %v509
      %542 = vst [vmem:[#allocation8 + $0xa0] sm:$0xff] %v510
      %543 = vst [vmem:[#allocation8 + $0xa8] sm:$0xff] %v511
      %544 = vst [vmem:[#allocation8 + $0xb0] sm:$0xff] %v512
      %545 = vst [vmem:[#allocation8 + $0xb8] sm:$0xff] %v513
      %546 = vst [vmem:[#allocation8 + $0xc0] sm:$0xff] %v514
      %547 = vst [vmem:[#allocation8 + $0xc8] sm:$0xff] %v515
      %548 = vst [vmem:[#allocation8 + $0xd0] sm:$0xff] %v516
      %549 = vst [vmem:[#allocation8 + $0xd8] sm:$0xff] %v517
      %550 = vst [vmem:[#allocation8 + $0xe0] sm:$0xff] %v518
      %551 = vst [vmem:[#allocation8 + $0xe8] sm:$0xff] %v519
      %552 = vst [vmem:[#allocation8 + $0xf0] sm:$0xff] %v520
      %553 = vst [vmem:[#allocation8 + $0xf8] sm:$0xff] %v521
    $region29: #{tpu_custom_call.1} parent=1 // pred_fallthru
      _
    // Predicated region
    $region30: #{tpu_custom_call.1} parent=1 // pred_check
      _
    $region31: #{tpu_custom_call.1} parent=1 // pred_check_branch
      %555 = sbr.rel (0) target = $region33
    $region32: #{tpu_custom_call.1} parent=1 // pred_region
      %s557 = ssub.s32 4096, 4096
      %558 = vsyncadd [#allocation5], %s557
      %s559 = sshll.u32 [#allocation8], 4
      %s560 = int_to_ptr.vmem [resolvable:$true] %s559
      %565 = dma.vmem_to_hbm [thread:$0]  %s560, 4096, %s3, [#allocation5], 128, 128, 8
    $region33: #{tpu_custom_call.1} parent=1 // pred_fallthru
      _
    // Predicated region
    $region34: #{tpu_custom_call.1} parent=1 // pred_check
      _
    $region35: #{tpu_custom_call.1} parent=1 // pred_check_branch
      %567 = sbr.rel (0) target = $region37
    $region36: #{tpu_custom_call.1} parent=1 // pred_region
      %568 = dma.done [#allocation5], 4096
    $region37: #{tpu_custom_call.1} parent=1 // pred_fallthru
      _
    %569 = vsyncpa [#allocation4], 1
    %570 = vsyncpa [#allocation7], 1
    %571 = vsyncpa [#allocation5], 1

</llo_original>
